<compile_context>
chip_gen: v7x
topology: tpu7x:2x2x1
jax: 0.10.0
libtpu: 0.0.40
codegen_flags: <defaults>
</compile_context>

<pallas_src>
import jax
import jax.numpy as jnp
from jax.experimental import pallas as pl
from jax.experimental.pallas import tpu as pltpu

LANE = 128
NC = 2          # N-split (columns of h / rows of W2) across TensorCores (v7x)
MAX_TB = 512    # largest single batch tile (acc scratch stays a few MiB)


def _round_up(x, m):
    return (x + m - 1) // m * m


def _pick_tk(hp):
    """Largest lane-multiple divisor of hp that is <= max(hp//4, 256)."""
    target = max(hp // 4, 2 * LANE)
    best = LANE
    for d in range(LANE, hp + 1, LANE):
        if hp % d == 0 and d <= target:
            best = d
    return best


def _epilogue_chunk(hn):
    """Largest lane-multiple divisor of hn that is <= 512 (else hn)."""
    best = hn
    for d in range(LANE, min(hn, 512) + 1, LANE):
        if hn % d == 0:
            best = d
    return best


def _head_kernel(x_ref, w1_ref, b1_ref, w2_ref, o_ref, acc_ref):
    # x_ref:  [tb, tk]    CLS-token hidden chunk (native dtype, cast to bf16)
    # w1_ref: [tk, Hn]    bf16 W1 slab (K rows k*tk.., output cols c*Hn..)
    # b1_ref: [1, Hn]     f32 dense bias (this core's half)
    # w2_ref: [Hn, Lp]    bf16 out_proj rows matching this core's h columns
    # o_ref:  [1, tb, Lp] f32 partial logits for this core's half
    # acc_ref:[tb, Hn]    f32 x @ W1 accumulator
    k = pl.program_id(2)
    nk = pl.num_programs(2)

    @pl.when(k == 0)
    def _init():
        acc_ref[...] = jnp.zeros_like(acc_ref)

    # Partial product of the first (hidden -> hidden) matmul on the MXU.
    x = x_ref[...].astype(w1_ref.dtype)           # bf16 operands, f32 accumulate
    acc_ref[...] += jnp.dot(x, w1_ref[...], preferred_element_type=jnp.float32)

    @pl.when(k == nk - 1)
    def _finalize():
        hn = acc_ref.shape[1]
        chunk = _epilogue_chunk(hn)
        logits = jnp.zeros(o_ref.shape[1:], jnp.float32)
        # Chunked tail: tanh (EUP) of chunk j overlaps MXU work of chunk j-1.
        for j in range(hn // chunk):
            sl = slice(j * chunk, (j + 1) * chunk)
            h = jnp.tanh(acc_ref[:, sl] + b1_ref[:, sl].astype(jnp.float32))
            logits = logits + jnp.dot(h.astype(w2_ref.dtype), w2_ref[sl, :],
                                      preferred_element_type=jnp.float32)
        o_ref[0] = logits


def esm_classification_head(features, w_dense, b_dense, w_out, b_out):
    """features: [B, S, H]; weights stored [in, out]; returns f32 logits [B, L]."""
    B, S, H = features.shape
    L = w_out.shape[1]

    # ---- Padded / tiled sizes (no-ops at real ESM sizes) --------------------
    Hp = _round_up(H, NC * LANE)   # real ESM hidden sizes (1280/2560) need no pad
    Hn = Hp // NC                  # per-core slice of h / W2 rows
    Lp = _round_up(L, LANE)        # lane-dense logits slab

    if B <= MAX_TB:
        Bp, tb = B, B              # single batch tile -> W1 streamed exactly once
    else:
        tb = 256                   # fallback: W1 re-streamed once per batch tile
        Bp = _round_up(B, tb)

    # ---- CLS rows without wrapper-side full-tensor copies -------------------
    if Hp == H and Bp == B:
        # Row-major zero-copy view: row b starts with the CLS token's hidden
        # vector, so hidden chunk k of CLS is columns [k*tk, (k+1)*tk).
        x2d = features.reshape(B, S * H)
    else:
        # Toy H / huge B only: pad a small [B, H] CLS slice, never the S*H view.
        x2d = features[:, 0, :].astype(jnp.bfloat16)
        x2d = jnp.pad(x2d, ((0, Bp - B), (0, Hp - H)))

    # ---- Weights: bf16 MXU operands (store params bf16 in production) -------
    w1 = w_dense.astype(jnp.bfloat16)
    w2 = w_out.astype(jnp.bfloat16)
    b1 = b_dense.astype(jnp.float32).reshape(1, -1)
    if Hp != H:
        w1 = jnp.pad(w1, ((0, Hp - H), (0, Hp - H)))
        w2 = jnp.pad(w2, ((0, Hp - H), (0, 0)))
        b1 = jnp.pad(b1, ((0, 0), (0, Hp - H)))
    if Lp != L:
        w2 = jnp.pad(w2, ((0, 0), (0, Lp - L)))

    # ---- Tiling --------------------------------------------------------------
    tk = _pick_tk(Hp)              # ~Hp/4, lane-multiple divisor of Hp
    nk = Hp // tk
    nb = Bp // tb

    grid_spec = pltpu.PrefetchScalarGridSpec(
        num_scalar_prefetch=0,
        grid=(NC, nb, nk),
        in_specs=[
            pl.BlockSpec((tb, tk), lambda c, b, k: (b, k)),   # CLS rows, K chunk
            pl.BlockSpec((tk, Hn), lambda c, b, k: (k, c)),   # W1 K slab, N half
            pl.BlockSpec((1, Hn), lambda c, b, k: (0, c)),    # b1 half
            pl.BlockSpec((Hn, Lp), lambda c, b, k: (c, 0)),   # W2 rows for half
        ],
        out_specs=pl.BlockSpec((1, tb, Lp), lambda c, b, k: (c, b, 0)),
        scratch_shapes=[pltpu.VMEM((tb, Hn), jnp.float32)],
    )

    out = pl.pallas_call(
        _head_kernel,
        out_shape=jax.ShapeDtypeStruct((NC, Bp, Lp), jnp.float32),
        grid_spec=grid_spec,
        compiler_params=pltpu.CompilerParams(
            dimension_semantics=("parallel", "parallel", "arbitrary"),
            vmem_limit_bytes=32 * 1024 * 1024),
    )(x2d, w1, b1, w2)

    # Sum the two per-core partial logit slabs, add b2, drop padding.
    logits = out.sum(axis=0)[:B, :L] + b_out.astype(jnp.float32)
    return logits


def _ref_forward(features, w_dense, b_dense, w_out, b_out):
    x = features[:, 0, :].astype(jnp.float32)
    h = jnp.tanh(x @ w_dense.astype(jnp.float32) + b_dense.astype(jnp.float32))
    return h @ w_out.astype(jnp.float32) + b_out.astype(jnp.float32)


if __name__ == "__main__":
    # Small config consistent with the module: hidden_size=32, num_labels=4.
    B, S, H, NUM_LABELS = 2, 8, 32, 4

    key = jax.random.PRNGKey(0)
    k_feat, k_w1, k_b1, k_w2, k_b2 = jax.random.split(key, 5)

    features = jax.random.normal(k_feat, (B, S, H), dtype=jnp.float32)

    # Deterministic parameter init (mirrors nn.Linear's uniform(-1/sqrt(in), 1/sqrt(in))).
    bound1 = 1.0 / (H ** 0.5)
    w_dense = jax.random.uniform(k_w1, (H, H), jnp.float32, -bound1, bound1)
    b_dense = jax.random.uniform(k_b1, (H,), jnp.float32, -bound1, bound1)
    w_out = jax.random.uniform(k_w2, (H, NUM_LABELS), jnp.float32, -bound1, bound1)
    b_out = jax.random.uniform(k_b2, (NUM_LABELS,), jnp.float32, -bound1, bound1)

    logits = esm_classification_head(features, w_dense, b_dense, w_out, b_out)
    logits = jax.block_until_ready(logits)

    ref = _ref_forward(features, w_dense, b_dense, w_out, b_out)
    assert logits.shape == (B, NUM_LABELS), logits.shape
    # bf16 MXU operands (f32 accumulate) -> compare against f32 ref with a
    # classification-head-appropriate tolerance.
    assert jnp.allclose(logits, ref, atol=2e-2, rtol=2e-2), "mismatch vs reference"

    print("KERNEL_OK")
</pallas_src>

<mosaic_0001>
module attributes {stable_mosaic.version = 11 : i64} {
  func.func @_head_kernel(%arg0: i32, %arg1: i32, %arg2: i32, %arg3: memref<2x256xbf16, #tpu.memory_space<vmem>>, %arg4: memref<256x128xbf16, #tpu.memory_space<vmem>>, %arg5: memref<1x128xf32, #tpu.memory_space<vmem>>, %arg6: memref<128x128xbf16, #tpu.memory_space<vmem>>, %arg7: memref<1x2x128xf32, #tpu.memory_space<vmem>>, %arg8: memref<2x128xf32, #tpu.memory_space<vmem>>) attributes {dimension_semantics = [#tpu.dimension_semantics<parallel>, #tpu.dimension_semantics<parallel>, #tpu.dimension_semantics<arbitrary>], iteration_bounds = array<i64: 2, 1, 1>, scalar_prefetch = 0 : i64, scratch_operands = 1 : i64, tpu.core_type = #tpu.core_type<tc>, window_params = [{transform_indices = @transform_0, window_bounds = array<i64: 2, 256>}, {transform_indices = @transform_1, window_bounds = array<i64: 256, 128>}, {transform_indices = @transform_2, window_bounds = array<i64: 1, 128>}, {transform_indices = @transform_3, window_bounds = array<i64: 128, 128>}, {transform_indices = @transform_4, window_bounds = array<i64: 1, 2, 128>}]} {
    %c0_i32 = arith.constant 0 : i32
    %0 = arith.cmpi eq, %arg2, %c0_i32 : i32
    %1 = arith.extui %0 : i1 to i32
    %c0_i32_0 = arith.constant 0 : i32
    %2 = arith.cmpi ne, %1, %c0_i32_0 : i32
    scf.if %2 {
      %cst_10 = arith.constant 0.000000e+00 : f32
      %12 = vector.broadcast %cst_10 : f32 to vector<2x128xf32>
      %c0_11 = arith.constant 0 : index
      %c0_12 = arith.constant 0 : index
      %13 = vector.load %arg8[%c0_11, %c0_12] : memref<2x128xf32, #tpu.memory_space<vmem>>, vector<2x128xf32>
      tpu.vector_store %arg8[%c0_11, %c0_12], %12 {strides = array<i32>} : memref<2x128xf32, #tpu.memory_space<vmem>>, vector<2x128xf32>,
    } else {
    }
    %c0 = arith.constant 0 : index
    %c0_1 = arith.constant 0 : index
    %3 = vector.load %arg3[%c0, %c0_1] : memref<2x256xbf16, #tpu.memory_space<vmem>>, vector<2x256xbf16>
    %c0_2 = arith.constant 0 : index
    %c0_3 = arith.constant 0 : index
    %4 = vector.load %arg8[%c0_2, %c0_3] : memref<2x128xf32, #tpu.memory_space<vmem>>, vector<2x128xf32>
    %c0_4 = arith.constant 0 : index
    %c0_5 = arith.constant 0 : index
    %5 = vector.load %arg4[%c0_4, %c0_5] : memref<256x128xbf16, #tpu.memory_space<vmem>>, vector<256x128xbf16>
    %cst = arith.constant dense<0.000000e+00> : vector<2x128xf32>
    %6 = tpu.matmul %3, %5, %cst {dimension_numbers = #tpu.dot_dimension_numbers<[1], [0], [0], [1], [0, 0, 1, 1], [], []>} : vector<2x256xbf16>, vector<256x128xbf16>, vector<2x128xf32> -> vector<2x128xf32>
    %7 = arith.addf %4, %6 : vector<2x128xf32>
    %c0_6 = arith.constant 0 : index
    %c0_7 = arith.constant 0 : index
    %8 = vector.load %arg8[%c0_6, %c0_7] : memref<2x128xf32, #tpu.memory_space<vmem>>, vector<2x128xf32>
    tpu.vector_store %arg8[%c0_6, %c0_7], %7 {strides = array<i32>} : memref<2x128xf32, #tpu.memory_space<vmem>>, vector<2x128xf32>,
    %c0_i32_8 = arith.constant 0 : i32
    %9 = arith.cmpi eq, %arg2, %c0_i32_8 : i32
    %10 = arith.extui %9 : i1 to i32
    %c0_i32_9 = arith.constant 0 : i32
    %11 = arith.cmpi ne, %10, %c0_i32_9 : i32
    scf.if %11 {
      %cst_10 = arith.constant 0.000000e+00 : f32
      %12 = vector.broadcast %cst_10 : f32 to vector<2x128xf32>
      %c0_11 = arith.constant 0 : index
      %c0_12 = arith.constant 0 : index
      %13 = vector.load %arg8[%c0_11, %c0_12] : memref<2x128xf32, #tpu.memory_space<vmem>>, vector<2x128xf32>
      %c0_13 = arith.constant 0 : index
      %c0_14 = arith.constant 0 : index
      %14 = vector.load %arg5[%c0_13, %c0_14] : memref<1x128xf32, #tpu.memory_space<vmem>>, vector<1x128xf32>
      %15 = vector.broadcast %14 : vector<1x128xf32> to vector<2x128xf32>
      %16 = arith.addf %13, %15 : vector<2x128xf32>
      %17 = math.tanh %16 : vector<2x128xf32>
      %18 = arith.truncf %17 : vector<2x128xf32> to vector<2x128xbf16>
      %c0_15 = arith.constant 0 : index
      %c0_16 = arith.constant 0 : index
      %19 = vector.load %arg6[%c0_15, %c0_16] : memref<128x128xbf16, #tpu.memory_space<vmem>>, vector<128x128xbf16>
      %cst_17 = arith.constant dense<0.000000e+00> : vector<2x128xf32>
      %20 = tpu.matmul %18, %19, %cst_17 {dimension_numbers = #tpu.dot_dimension_numbers<[1], [0], [0], [1], [0, 0, 1, 1], [], []>} : vector<2x128xbf16>, vector<128x128xbf16>, vector<2x128xf32> -> vector<2x128xf32>
      %21 = arith.addf %12, %20 : vector<2x128xf32>
      %c0_18 = arith.constant 0 : index
      %c0_19 = arith.constant 0 : index
      %c0_20 = arith.constant 0 : index
      %22 = vector.load %arg7[%c0_18, %c0_19, %c0_20] : memref<1x2x128xf32, #tpu.memory_space<vmem>>, vector<1x2x128xf32>
      %23 = vector.shape_cast %22 : vector<1x2x128xf32> to vector<2x128xf32>
      %24 = vector.shape_cast %21 : vector<2x128xf32> to vector<1x2x128xf32>
      tpu.vector_store %arg7[%c0_18, %c0_19, %c0_20], %24 {strides = array<i32>} : memref<1x2x128xf32, #tpu.memory_space<vmem>>, vector<1x2x128xf32>,
    } else {
    }
    return
  }
  func.func @transform_0(%arg0: i32, %arg1: i32, %arg2: i32) -> (i32, i32) {
    %c0_i32 = arith.constant 0 : i32
    return %arg1, %arg2 : i32, i32
  }
  func.func @transform_1(%arg0: i32, %arg1: i32, %arg2: i32) -> (i32, i32) {
    %c0_i32 = arith.constant 0 : i32
    return %arg2, %arg0 : i32, i32
  }
  func.func @transform_2(%arg0: i32, %arg1: i32, %arg2: i32) -> (i32, i32) {
    %c0_i32 = arith.constant 0 : i32
    %c0_i32_0 = arith.constant 0 : i32
    return %c0_i32, %arg0 : i32, i32
  }
  func.func @transform_3(%arg0: i32, %arg1: i32, %arg2: i32) -> (i32, i32) {
    %c0_i32 = arith.constant 0 : i32
    %c0_i32_0 = arith.constant 0 : i32
    return %arg0, %c0_i32 : i32, i32
  }
  func.func @transform_4(%arg0: i32, %arg1: i32, %arg2: i32) -> (i32, i32, i32) {
    %c0_i32 = arith.constant 0 : i32
    %c0_i32_0 = arith.constant 0 : i32
    return %arg0, %arg1, %c0_i32 : i32, i32, i32
  }
}

</mosaic_0001>

<llo_original>
// kernel: tpu_custom_call.1
$region0: #{tpu_custom_call.1}
  #allocation0 [shape = 'u32[]', space=smem, size = 0x4, offset = 0x4, fixed_abs, tag = 'smem constant byte address 0x4 - core index']
  #allocation1 [shape = 'u32[144,128]{1,0:T(1,128)}', space=vmem, size = 0x12000, scoped, tag = 'internal scratch']
  #allocation2 [shape = 'f32[2,128]{1,0:T(2,128)}', space=vmem, size = 0x400, scoped, tag = 'scratch operand']
  %s0 = inlined_call_operand.hbm [shape: bf16[2,256], index: 0, kind: input, shape index: {}]
  %s1 = inlined_call_operand.hbm [shape: bf16[256,256], index: 1, kind: input, shape index: {}]
  %s2 = inlined_call_operand.vmem [shape: f32[1,256], index: 2, kind: input, shape index: {}]
  %s3 = inlined_call_operand.hbm [shape: bf16[256,128], index: 3, kind: input, shape index: {}]
  %s4 = inlined_call_operand.hbm [shape: f32[2,2,128], index: 4, kind: output, shape index: {}]
  %s5 = sld [smem:[#allocation0]]
  $region69: #{tpu_custom_call.1} parent=0
    _
  %s7 = ssub.s32 1, %s5
  %s8 = scalar_select 0, %s7, %s5
  $region1: #{tpu_custom_call.1} parent=0
    #allocation3 [shape = 'u8[1024]{0}', space=vmem, size = 0x400, scoped, tag = 'input window, operand 0, single buffered']
    #allocation4 [shape = 's32[2]{0}', space=sflag, size = 0x8, scoped, tag = 'scoped memory for tpu_custom_call.1']
    #allocation5 [shape = 's32[2]{0}', space=sflag, size = 0x8, scoped, tag = 'scoped memory for tpu_custom_call.1']
    #allocation6 [shape = 'u8[131072]{0}', space=vmem, size = 0x20000, scoped, tag = 'input window, operand 1']
    #allocation7 [shape = 's32[2]{0}', space=sflag, size = 0x8, scoped, tag = 'scoped memory for tpu_custom_call.1']
    #allocation8 [shape = 'u8[65536]{0}', space=vmem, size = 0x10000, scoped, tag = 'input window, operand 3']
    #allocation9 [shape = 'u8[2048]{0}', space=vmem, size = 0x800, scoped, tag = 'output window, operand 0']
    %9 = vsyncpa [#allocation4], 0
    %10 = vsyncpa [#allocation7], 0
    %s11 = scalar_lea.sflag [#allocation7], 1
    %12 = vsyncpa %s11, 0
    %13 = vsyncpa [#allocation5], 0
    %s14 = scalar_lea.sflag [#allocation5], 1
    %15 = vsyncpa %s14, 0
    loop: start=0, step=1, limit=4
    $region2: #{tpu_custom_call.1} parent=1 // loop_pre_header
      _
    $region3: #{tpu_custom_call.1} parent=1 // loop_header
      %s17 = sphi 0, %s21
      %p18 = scmp.ge.s32.totalorder %s17, 4
      %s24 = sphi 0, %s43
      %s25 = sphi 0, %s39
      %s26 = sphi 0, %s35
      %s27 = sphi 0, %s24
      %s28 = sphi 0, %s25
      %s29 = sphi 0, %s26
      %s30 = sphi 0, %s27
      %s31 = sphi 0, %s28
      %s32 = sphi 0, %s29
      %s48 = sphi 0, %s50
      %s51 = sphi 0, %s48
      %s52 = sphi 0, %s51
      %s68 = sphi 0, %s52
      %s76 = sphi 0, %s78
      %s79 = sphi 0, %s76
      %s80 = sphi 0, %s79
      %s96 = sphi 0, %s80
      %s102 = sphi 0, %s104
      %s105 = sphi 0, %s102
      %s106 = sphi 0, %s105
      %s122 = sphi 0, %s106
      %s128 = sphi 0, %s130
      %s131 = sphi 0, %s128
      %s132 = sphi 0, %s131
      %s148 = sphi 0, %s132
      %s156 = sphi 0, %s158
      %s159 = sphi 0, %s156
      %s160 = sphi 0, %s159
      %s176 = sphi 0, %s160
    $region4: #{tpu_custom_call.1} parent=1 // loop_header_branch
      %20 = sbr.rel (%p18) target = $region8
    $region5: #{tpu_custom_call.1} parent=1 // loop_body
      %s22 = ssub.s32 %s17, 1
      %s23 = ssub.s32 %s17, 2
      %s33 = sadd.s32 1, %s26
      %p34 = scmp.ge.s32.totalorder %s33, 1
      %s35 = scalar_select %p34, 0, %s33
      %s36 = sadd.s32 1, %s25
      %s37 = scalar_select %p34, %s36, %s25
      %p38 = scmp.ge.s32.totalorder %s37, 1
      %s39 = scalar_select %p38, 0, %s37
      %s40 = sadd.s32 1, %s24
      %s41 = scalar_select %p38, %s40, %s24
      %p42 = scmp.ge.s32.totalorder %s41, 2
      %s43 = scalar_select %p42, 0, %s41
      %s44 = ssub.s32 %s25, %s39
      %s45 = ssub.s32 %s26, %s35
      %s46 = sor.u32 %s44, %s45
      %p47 = scmp.eq.s32.totalorder %s46, 0
      %s49 = sadd.s32 %s48, 1
      %s50 = scalar_select %p47, %s48, %s49
      %p53 = pneg %p47
      %p54 = scmp.eq.s32.totalorder %s17, 1
      %p55 = por %p53, %p54
      %p56 = scmp.ne.s32.totalorder %s48, %s51
      %p57 = scmp.eq.s32.totalorder %s17, 0
      %p58 = por %p56, %p57
      %p59 = scmp.ne.s32.totalorder %s48, %s51
      %p60 = scmp.eq.s32.totalorder %s22, 1
      %p61 = por %p59, %p60
      %p62 = scmp.ne.s32.totalorder %s51, %s52
      %p63 = scmp.eq.s32.totalorder %s22, 0
      %p64 = por %p62, %p63
      %p65 = scmp.ne.s32.totalorder %s51, %s52
      %p66 = scmp.eq.s32.totalorder %s23, 1
      %p67 = por %p65, %p66
      %p69 = scmp.ne.s32.totalorder %s52, %s68
      %p70 = scmp.eq.s32.totalorder %s23, 0
      %p71 = por %p69, %p70
      %s72 = ssub.s32 %s26, %s35
      %s73 = ssub.s32 %s24, %s43
      %s74 = sor.u32 %s72, %s73
      %p75 = scmp.eq.s32.totalorder %s74, 0
      %s77 = sadd.s32 %s76, 1
      %s78 = scalar_select %p75, %s76, %s77
      %p81 = pneg %p75
      %p82 = scmp.eq.s32.totalorder %s17, 1
      %p83 = por %p81, %p82
      %p84 = scmp.ne.s32.totalorder %s76, %s79
      %p85 = scmp.eq.s32.totalorder %s17, 0
      %p86 = por %p84, %p85
      %p87 = scmp.ne.s32.totalorder %s76, %s79
      %p88 = scmp.eq.s32.totalorder %s22, 1
      %p89 = por %p87, %p88
      %p90 = scmp.ne.s32.totalorder %s79, %s80
      %p91 = scmp.eq.s32.totalorder %s22, 0
      %p92 = por %p90, %p91
      %p93 = scmp.ne.s32.totalorder %s79, %s80
      %p94 = scmp.eq.s32.totalorder %s23, 1
      %p95 = por %p93, %p94
      %p97 = scmp.ne.s32.totalorder %s80, %s96
      %p98 = scmp.eq.s32.totalorder %s23, 0
      %p99 = por %p97, %p98
      %s100 = ssub.s32 %s24, %s43
      %p101 = scmp.eq.s32.totalorder %s100, 0
      %s103 = sadd.s32 %s102, 1
      %s104 = scalar_select %p101, %s102, %s103
      %p107 = pneg %p101
      %p108 = scmp.eq.s32.totalorder %s17, 1
      %p109 = por %p107, %p108
      %p110 = scmp.ne.s32.totalorder %s102, %s105
      %p111 = scmp.eq.s32.totalorder %s17, 0
      %p112 = por %p110, %p111
      %p113 = scmp.ne.s32.totalorder %s102, %s105
      %p114 = scmp.eq.s32.totalorder %s22, 1
      %p115 = por %p113, %p114
      %p116 = scmp.ne.s32.totalorder %s105, %s106
      %p117 = scmp.eq.s32.totalorder %s22, 0
      %p118 = por %p116, %p117
      %p119 = scmp.ne.s32.totalorder %s105, %s106
      %p120 = scmp.eq.s32.totalorder %s23, 1
      %p121 = por %p119, %p120
      %p123 = scmp.ne.s32.totalorder %s106, %s122
      %p124 = scmp.eq.s32.totalorder %s23, 0
      %p125 = por %p123, %p124
      %s126 = ssub.s32 %s24, %s43
      %p127 = scmp.eq.s32.totalorder %s126, 0
      %s129 = sadd.s32 %s128, 1
      %s130 = scalar_select %p127, %s128, %s129
      %p133 = pneg %p127
      %p134 = scmp.eq.s32.totalorder %s17, 1
      %p135 = por %p133, %p134
      %p136 = scmp.ne.s32.totalorder %s128, %s131
      %p137 = scmp.eq.s32.totalorder %s17, 0
      %p138 = por %p136, %p137
      %p139 = scmp.ne.s32.totalorder %s128, %s131
      %p140 = scmp.eq.s32.totalorder %s22, 1
      %p141 = por %p139, %p140
      %p142 = scmp.ne.s32.totalorder %s131, %s132
      %p143 = scmp.eq.s32.totalorder %s22, 0
      %p144 = por %p142, %p143
      %p145 = scmp.ne.s32.totalorder %s131, %s132
      %p146 = scmp.eq.s32.totalorder %s23, 1
      %p147 = por %p145, %p146
      %p149 = scmp.ne.s32.totalorder %s132, %s148
      %p150 = scmp.eq.s32.totalorder %s23, 0
      %p151 = por %p149, %p150
      %s152 = ssub.s32 %s24, %s43
      %s153 = ssub.s32 %s25, %s39
      %s154 = sor.u32 %s152, %s153
      %p155 = scmp.eq.s32.totalorder %s154, 0
      %s157 = sadd.s32 %s156, 1
      %s158 = scalar_select %p155, %s156, %s157
      %p161 = pneg %p155
      %p162 = scmp.eq.s32.totalorder %s17, 1
      %p163 = por %p161, %p162
      %p164 = scmp.ne.s32.totalorder %s156, %s159
      %p165 = scmp.eq.s32.totalorder %s17, 0
      %p166 = por %p164, %p165
      %p167 = scmp.ne.s32.totalorder %s156, %s159
      %p168 = scmp.eq.s32.totalorder %s22, 1
      %p169 = por %p167, %p168
      %p170 = scmp.ne.s32.totalorder %s159, %s160
      %p171 = scmp.eq.s32.totalorder %s22, 0
      %p172 = por %p170, %p171
      %p173 = scmp.ne.s32.totalorder %s159, %s160
      %p174 = scmp.eq.s32.totalorder %s23, 1
      %p175 = por %p173, %p174
      %p177 = scmp.ne.s32.totalorder %s160, %s176
      %p178 = scmp.eq.s32.totalorder %s23, 0
      %p179 = por %p177, %p178
      %p180 = scmp.le.s32.totalorder 1, %s17
      %p181 = scmp.lt.s32.totalorder %s17, 3
      %p182 = pnand %p180, %p181
      %p183 = pneg %p182
      // Predicated region
      $region9: #{tpu_custom_call.1} parent=5 // pred_check
        _
      $region10: #{tpu_custom_call.1} parent=5 // pred_check_branch
        %185 = sbr.rel (%p182) target = $region12
      $region11: #{tpu_custom_call.1} parent=5 // pred_region
        %s186 = ssub.s32 %s17, 1
        // Predicated region
        $region13: #{tpu_custom_call.1} parent=11 // pred_check
          %p187 = pneg %p64
        $region14: #{tpu_custom_call.1} parent=11 // pred_check_branch
          %189 = sbr.rel (%p187) target = $region16
        $region15: #{tpu_custom_call.1} parent=11 // pred_region
          %s190 = smul.u32 2, %s29
          %s192 = ssub.s32 32, 32
          %193 = vsyncadd [#allocation4], %s192
          %s194 = smul.addr %s28, 2
          %s195 = sadd.s32 %s190, %s194
          %s196 = smul.addr %s195, 16
          %s197 = scalar_lea.hbm %s0, %s196
          %s199 = sshll.u32 [#allocation3], 4
          %s200 = int_to_ptr.vmem [resolvable:$true] %s199
          %202 = dma.hbm_to_vmem [thread:$0]  %s197, 32, %s200, [#allocation4]
        $region16: #{tpu_custom_call.1} parent=11 // pred_fallthru
          _
      $region12: #{tpu_custom_call.1} parent=5 // pred_fallthru
        _
      %p203 = scmp.lt.s32.totalorder %s17, 2
      // Predicated region
      $region17: #{tpu_custom_call.1} parent=5 // pred_check
        %p204 = pneg %p203
      $region18: #{tpu_custom_call.1} parent=5 // pred_check_branch
        %206 = sbr.rel (%p204) target = $region20
      $region19: #{tpu_custom_call.1} parent=5 // pred_region
        // Predicated region
        $region21: #{tpu_custom_call.1} parent=19 // pred_check
          %p207 = pneg %p86
        $region22: #{tpu_custom_call.1} parent=19 // pred_check_branch
          %209 = sbr.rel (%p207) target = $region24
        $region23: #{tpu_custom_call.1} parent=19 // pred_region
          %s210 = sand.u32 %s17, 1
          %s211 = scalar_lea.sflag [#allocation7], %s210
          %s212 = sand.u32 %s76, 1
          %s213 = smul.addr %s212, 128
          %s214 = scalar_lea.vmem [#allocation6], %s213
          %s215 = smul.u32 32, %s26
          %s217 = ssub.s32 2048, 2048
          %218 = vsyncadd %s211, %s217
          %s219 = smul.addr %s215, 2
          %s220 = sadd.s32 %s24, %s219
          %s221 = smul.addr %s220, 64
          %s222 = scalar_lea.hbm %s1, %s221
          %s223 = sshll.u32 %s214, 4
          %s224 = int_to_ptr.vmem [resolvable:$true] %s223
          %229 = dma.hbm_to_vmem [thread:$0]  %s222, 2048, %s224, %s211, 128, 64, 4
        $region24: #{tpu_custom_call.1} parent=19 // pred_fallthru
          _
        // Predicated region
        $region25: #{tpu_custom_call.1} parent=19 // pred_check
          %p230 = pneg %p112
        $region26: #{tpu_custom_call.1} parent=19 // pred_check_branch
          %232 = sbr.rel (%p230) target = $region28
        $region27: #{tpu_custom_call.1} parent=19 // pred_region
          %p233 = scmp.lt.s32.totalorder %s24, 1
          %s234 = scalar_select %p233, %s24, 1
          %s235 = scalar_lea.vmem %s2, %s234
        $region28: #{tpu_custom_call.1} parent=19 // pred_fallthru
          _
        // Predicated region
        $region29: #{tpu_custom_call.1} parent=19 // pred_check
          %p236 = pneg %p138
        $region30: #{tpu_custom_call.1} parent=19 // pred_check_branch
          %238 = sbr.rel (%p236) target = $region32
        $region31: #{tpu_custom_call.1} parent=19 // pred_region
          %s239 = sand.u32 %s17, 1
          %s240 = scalar_lea.sflag [#allocation7], %s239
          %s241 = sand.u32 %s128, 1
          %s242 = smul.addr %s241, 64
          %s243 = scalar_lea.vmem [#allocation8], %s242
          %s244 = smul.u32 16, %s24
          %s246 = ssub.s32 1024, 1024
          %247 = vsyncadd %s240, %s246
          %s248 = smul.addr %s244, 64
          %s249 = scalar_lea.hbm %s3, %s248
          %s250 = sshll.u32 %s243, 4
          %s251 = int_to_ptr.vmem [resolvable:$true] %s250
          %256 = dma.hbm_to_vmem [thread:$0]  %s249, 1024, %s251, %s240, 64, 64, 4
        $region32: #{tpu_custom_call.1} parent=19 // pred_fallthru
          _
      $region20: #{tpu_custom_call.1} parent=5 // pred_fallthru
        _
      %p257 = scmp.le.s32.totalorder 1, %s17
      %p258 = scmp.lt.s32.totalorder %s17, 3
      %p259 = pnand %p257, %p258
      %p260 = pneg %p259
      // Predicated region
      $region33: #{tpu_custom_call.1} parent=5 // pred_check
        _
      $region34: #{tpu_custom_call.1} parent=5 // pred_check_branch
        %262 = sbr.rel (%p259) target = $region36
      $region35: #{tpu_custom_call.1} parent=5 // pred_region
        %s263 = ssub.s32 %s17, 1
        // Predicated region
        $region37: #{tpu_custom_call.1} parent=35 // pred_check
          %p264 = pneg %p64
        $region38: #{tpu_custom_call.1} parent=35 // pred_check_branch
          %266 = sbr.rel (%p264) target = $region40
        $region39: #{tpu_custom_call.1} parent=35 // pred_region
          %267 = dma.done [#allocation4], 32
        $region40: #{tpu_custom_call.1} parent=35 // pred_fallthru
          _
        %s268 = sand.u32 %s22, 1
        %s269 = scalar_lea.sflag [#allocation7], %s268
        %s270 = sand.u32 %s79, 1
        %s271 = smul.addr %s270, 128
        %s272 = scalar_lea.vmem [#allocation6], %s271
        // Predicated region
        $region41: #{tpu_custom_call.1} parent=35 // pred_check
          %p273 = pneg %p92
        $region42: #{tpu_custom_call.1} parent=35 // pred_check_branch
          %275 = sbr.rel (%p273) target = $region44
        $region43: #{tpu_custom_call.1} parent=35 // pred_region
          %276 = dma.done %s269, 2048
        $region44: #{tpu_custom_call.1} parent=35 // pred_fallthru
          _
        %s277 = sand.u32 %s22, 1
        %s278 = scalar_lea.sflag [#allocation7], %s277
        %s279 = sand.u32 %s131, 1
        %s280 = smul.addr %s279, 64
        %s281 = scalar_lea.vmem [#allocation8], %s280
        // Predicated region
        $region45: #{tpu_custom_call.1} parent=35 // pred_check
          %p282 = pneg %p144
        $region46: #{tpu_custom_call.1} parent=35 // pred_check_branch
          %284 = sbr.rel (%p282) target = $region48
        $region47: #{tpu_custom_call.1} parent=35 // pred_region
          %285 = dma.done %s278, 1024
        $region48: #{tpu_custom_call.1} parent=35 // pred_fallthru
          _
        %p286 = pneg %p64
        %p287 = pneg %p61
        %s288 = sand.u32 %s22, 1
        %s289 = scalar_lea.sflag [#allocation7], %s288
        %s290 = sand.u32 %s79, 1
        %s291 = smul.addr %s290, 128
        %s292 = scalar_lea.vmem [#allocation6], %s291
        %p293 = pneg %p92
        %p294 = pneg %p89
        %p295 = scmp.lt.s32.totalorder %s27, 1
        %s296 = scalar_select %p295, %s27, 1
        %s297 = scalar_lea.vmem %s2, %s296
        %p298 = pneg %p118
        %p299 = pneg %p115
        %s300 = sand.u32 %s22, 1
        %s301 = scalar_lea.sflag [#allocation7], %s300
        %s302 = sand.u32 %s131, 1
        %s303 = smul.addr %s302, 64
        %s304 = scalar_lea.vmem [#allocation8], %s303
        %p305 = pneg %p144
        %p306 = pneg %p141
        %p307 = pneg %p172
        %p308 = pneg %p169
        %s309 = sand.u32 %s159, 1
        %s310 = scalar_lea.sflag [#allocation5], %s309
        %s311 = sand.u32 %s159, 1
        %s312 = smul.addr %s311, 2
        %s313 = scalar_lea.vmem [#allocation9], %s312
        %s314 = smul.u32 2, %s29
        %s315 = smul.u32 32, %s29
        %p316 = scmp.lt.s32.totalorder %s27, 1
        %s317 = scalar_select %p316, %s27, 1
        %s318 = scalar_lea.vmem %s2, %s317
        %s319 = smul.u32 16, %s27
        %p321 = scmp.eq.s32.totalorder %s29, 0
        // Predicated region
        $region49: #{tpu_custom_call.1} parent=35 // pred_check
          %p322 = pneg %p321
        $region50: #{tpu_custom_call.1} parent=35 // pred_check_branch
          %324 = sbr.rel (%p322) target = $region52
        $region51: #{tpu_custom_call.1} parent=35 // pred_region
          %325 = vst [vmem:[#allocation2] sm:$0x3] 0.0
        $region52: #{tpu_custom_call.1} parent=35 // pred_fallthru
          _
        %v326 = vld [vmem:[#allocation3] sm:$0x3]
        %v327 = vld [vmem:[#allocation2] sm:$0x3]
        %v328 = vld [vmem:[%s272] sm:$0xf]
        %v329 = vld [vmem:[%s272 + $0x4] sm:$0xf]
        %v330 = vld [vmem:[%s272 + $0x8] sm:$0xf]
        %v331 = vld [vmem:[%s272 + $0xc] sm:$0xf]
        %v332 = vld [vmem:[%s272 + $0x10] sm:$0xf]
        %v333 = vld [vmem:[%s272 + $0x14] sm:$0xf]
        %v334 = vld [vmem:[%s272 + $0x18] sm:$0xf]
        %v335 = vld [vmem:[%s272 + $0x1c] sm:$0xf]
        %v336 = vld [vmem:[%s272 + $0x20] sm:$0xf]
        %v337 = vld [vmem:[%s272 + $0x24] sm:$0xf]
        %v338 = vld [vmem:[%s272 + $0x28] sm:$0xf]
        %v339 = vld [vmem:[%s272 + $0x2c] sm:$0xf]
        %v340 = vld [vmem:[%s272 + $0x30] sm:$0xf]
        %v341 = vld [vmem:[%s272 + $0x34] sm:$0xf]
        %v342 = vld [vmem:[%s272 + $0x38] sm:$0xf]
        %v343 = vld [vmem:[%s272 + $0x3c] sm:$0xf]
        %v344 = vld [vmem:[%s272 + $0x40] sm:$0xf]
        %v345 = vld [vmem:[%s272 + $0x44] sm:$0xf]
        %v346 = vld [vmem:[%s272 + $0x48] sm:$0xf]
        %v347 = vld [vmem:[%s272 + $0x4c] sm:$0xf]
        %v348 = vld [vmem:[%s272 + $0x50] sm:$0xf]
        %v349 = vld [vmem:[%s272 + $0x54] sm:$0xf]
        %v350 = vld [vmem:[%s272 + $0x58] sm:$0xf]
        %v351 = vld [vmem:[%s272 + $0x5c] sm:$0xf]
        %v352 = vld [vmem:[%s272 + $0x60] sm:$0xf]
        %v353 = vld [vmem:[%s272 + $0x64] sm:$0xf]
        %v354 = vld [vmem:[%s272 + $0x68] sm:$0xf]
        %v355 = vld [vmem:[%s272 + $0x6c] sm:$0xf]
        %v356 = vld [vmem:[%s272 + $0x70] sm:$0xf]
        %v357 = vld [vmem:[%s272 + $0x74] sm:$0xf]
        %v358 = vld [vmem:[%s272 + $0x78] sm:$0xf]
        %v359 = vld [vmem:[%s272 + $0x7c] sm:$0xf]
        %v362 = vunpack.c.l.s4 1966171168
        %v363 = vunpack.c.0.s8 %v362
        %v364 = vlaneseq
        %v365 = vshrl.u32 %v364, 7
        %v366 = vsub.s32 %v363, %v365
        %v367 = vrot.slane %v326, %v366
        %v368 = vcombine.high %v367, %v367
        %v370 = vunpack.c.l.s4 1966171168
        %v371 = vunpack.c.0.s8 %v370
        %v372 = vlaneseq
        %v373 = vshrl.u32 %v372, 7
        %v374 = vsub.s32 %v371, %v373
        %v375 = vrot.slane %v367, %v374
        %v377 = vunpack.c.l.s4 1966171168
        %v378 = vunpack.c.0.s8 %v377
        %v379 = vlaneseq
        %v380 = vshrl.u32 %v379, 7
        %v381 = vsub.s32 %v378, %v380
        %v382 = vrot.slane %v368, %v381
        %v417 = vunpack.c.l.b16 %v328
        %v418 = vunpack.c.l.b16 %v329
        %v419 = vunpack.c.l.b16 %v330
        %v420 = vunpack.c.l.b16 %v331
        %v421 = vunpack.c.l.b16 %v332
        %v422 = vunpack.c.l.b16 %v333
        %v423 = vunpack.c.l.b16 %v334
        %v424 = vunpack.c.l.b16 %v335
        %v425 = vunpack.c.l.b16 %v336
        %v426 = vunpack.c.l.b16 %v337
        %v427 = vunpack.c.l.b16 %v338
        %v428 = vunpack.c.l.b16 %v339
        %v429 = vunpack.c.l.b16 %v340
        %v430 = vunpack.c.l.b16 %v341
        %v431 = vunpack.c.l.b16 %v342
        %v432 = vunpack.c.l.b16 %v343
        %v433 = vunpack.c.l.b16 %v344
        %v434 = vunpack.c.l.b16 %v345
        %v435 = vunpack.c.l.b16 %v346
        %v436 = vunpack.c.l.b16 %v347
        %v437 = vunpack.c.l.b16 %v348
        %v438 = vunpack.c.l.b16 %v349
        %v439 = vunpack.c.l.b16 %v350
        %v440 = vunpack.c.l.b16 %v351
        %v441 = vunpack.c.l.b16 %v352
        %v442 = vunpack.c.l.b16 %v353
        %v443 = vunpack.c.l.b16 %v354
        %v444 = vunpack.c.l.b16 %v355
        %v445 = vunpack.c.l.b16 %v356
        %v446 = vunpack.c.l.b16 %v357
        %v447 = vunpack.c.l.b16 %v358
        %v448 = vunpack.c.l.b16 %v359
        %v449 = vpack.c.b16 %v418, %v417
        %v450 = vpack.c.b16 %v420, %v419
        %v451 = vpack.c.b16 %v422, %v421
        %v452 = vpack.c.b16 %v424, %v423
        %v453 = vpack.c.b16 %v426, %v425
        %v454 = vpack.c.b16 %v428, %v427
        %v455 = vpack.c.b16 %v430, %v429
        %v456 = vpack.c.b16 %v432, %v431
        %v457 = vpack.c.b16 %v434, %v433
        %v458 = vpack.c.b16 %v436, %v435
        %v459 = vpack.c.b16 %v438, %v437
        %v460 = vpack.c.b16 %v440, %v439
        %v461 = vpack.c.b16 %v442, %v441
        %v462 = vpack.c.b16 %v444, %v443
        %v463 = vpack.c.b16 %v446, %v445
        %v464 = vpack.c.b16 %v448, %v447
        %481 = vmatprep.subr.bf16.mxu0 0
        %482 = vmatpush1.bf16.msra.mxu0 %v449
        %483 = vmatprep.subr.bf16.mxu0 0
        %484 = vmatpush1.bf16.msra.mxu0 %v450
        %485 = vmatprep.subr.bf16.mxu0 0
        %486 = vmatpush1.bf16.msra.mxu0 %v451
        %487 = vmatprep.subr.bf16.mxu0 0
        %488 = vmatpush1.bf16.msra.mxu0 %v452
        %489 = vmatprep.subr.bf16.mxu0 0
        %490 = vmatpush1.bf16.msra.mxu0 %v453
        %491 = vmatprep.subr.bf16.mxu0 0
        %492 = vmatpush1.bf16.msra.mxu0 %v454
        %493 = vmatprep.subr.bf16.mxu0 0
        %494 = vmatpush1.bf16.msra.mxu0 %v455
        %495 = vmatprep.subr.bf16.mxu0 0
        %496 = vmatpush1.bf16.msra.mxu0 %v456
        %497 = vmatprep.subr.bf16.mxu0 0
        %498 = vmatpush1.bf16.msra.mxu0 %v457
        %499 = vmatprep.subr.bf16.mxu0 0
        %500 = vmatpush1.bf16.msra.mxu0 %v458
        %501 = vmatprep.subr.bf16.mxu0 0
        %502 = vmatpush1.bf16.msra.mxu0 %v459
        %503 = vmatprep.subr.bf16.mxu0 0
        %504 = vmatpush1.bf16.msra.mxu0 %v460
        %505 = vmatprep.subr.bf16.mxu0 0
        %506 = vmatpush1.bf16.msra.mxu0 %v461
        %507 = vmatprep.subr.bf16.mxu0 0
        %508 = vmatpush1.bf16.msra.mxu0 %v462
        %509 = vmatprep.subr.bf16.mxu0 0
        %510 = vmatpush1.bf16.msra.mxu0 %v463
        %511 = vmatprep.subr.bf16.mxu0 0
        %512 = vmatpush1.bf16.msra.mxu0 %v464
        %513 = vmatprep.mubr.bf16.mxu0 %v382
        %514 = vmatmul.mubr.bf16.gmra.mrb[0].mxu0 %v375
        %v515 = vpop.f32.mrb[0].mxu0
        %v516 = vadd.f32 0.0, %v515
        %v517 = vpop.f32.mrb[0].mxu0
        %v518 = vpop.f32.mrb[0].mxu0
        %v519 = vpop.f32.mrb[0].mxu0
        %520 = vdwg.mxu0
        %v521 = vadd.f32 %v327, %v516
        %522 = vst [vmem:[#allocation2] sm:$0x3] %v521
        // Predicated region
        $region53: #{tpu_custom_call.1} parent=35 // pred_check
          %p523 = pneg %p321
        $region54: #{tpu_custom_call.1} parent=35 // pred_check_branch
          %525 = sbr.rel (%p523) target = $region56
        $region55: #{tpu_custom_call.1} parent=35 // pred_region
          %v526 = vld [vmem:[#allocation2] sm:$0x3]
          %v527 = vld [vmem:[%s318] sm:$0x1]
          %v529 = vlaneseq
          %v530 = vshrl.u32 %v529, 7
          %v531 = vsub.s32 0, %v530
          %v532 = vrot.slane %v527, %v531
          %v534 = vadd.f32 %v526, %v532
          %v535 = vtanh.pop %v534
          %v536 = vpack.c.bf16 %v535, %v535
          %v537 = vld [vmem:[%s281] sm:$0xf]
          %v538 = vld [vmem:[%s281 + $0x4] sm:$0xf]
          %v539 = vld [vmem:[%s281 + $0x8] sm:$0xf]
          %v540 = vld [vmem:[%s281 + $0xc] sm:$0xf]
          %v541 = vld [vmem:[%s281 + $0x10] sm:$0xf]
          %v542 = vld [vmem:[%s281 + $0x14] sm:$0xf]
          %v543 = vld [vmem:[%s281 + $0x18] sm:$0xf]
          %v544 = vld [vmem:[%s281 + $0x1c] sm:$0xf]
          %v545 = vld [vmem:[%s281 + $0x20] sm:$0xf]
          %v546 = vld [vmem:[%s281 + $0x24] sm:$0xf]
          %v547 = vld [vmem:[%s281 + $0x28] sm:$0xf]
          %v548 = vld [vmem:[%s281 + $0x2c] sm:$0xf]
          %v549 = vld [vmem:[%s281 + $0x30] sm:$0xf]
          %v550 = vld [vmem:[%s281 + $0x34] sm:$0xf]
          %v551 = vld [vmem:[%s281 + $0x38] sm:$0xf]
          %v552 = vld [vmem:[%s281 + $0x3c] sm:$0xf]
          %v569 = vunpack.c.l.b16 %v537
          %v570 = vunpack.c.l.b16 %v538
          %v571 = vunpack.c.l.b16 %v539
          %v572 = vunpack.c.l.b16 %v540
          %v573 = vunpack.c.l.b16 %v541
          %v574 = vunpack.c.l.b16 %v542
          %v575 = vunpack.c.l.b16 %v543
          %v576 = vunpack.c.l.b16 %v544
          %v577 = vunpack.c.l.b16 %v545
          %v578 = vunpack.c.l.b16 %v546
          %v579 = vunpack.c.l.b16 %v547
          %v580 = vunpack.c.l.b16 %v548
          %v581 = vunpack.c.l.b16 %v549
          %v582 = vunpack.c.l.b16 %v550
          %v583 = vunpack.c.l.b16 %v551
          %v584 = vunpack.c.l.b16 %v552
          %v585 = vpack.c.b16 %v570, %v569
          %v586 = vpack.c.b16 %v572, %v571
          %v587 = vpack.c.b16 %v574, %v573
          %v588 = vpack.c.b16 %v576, %v575
          %v589 = vpack.c.b16 %v578, %v577
          %v590 = vpack.c.b16 %v580, %v579
          %v591 = vpack.c.b16 %v582, %v581
          %v592 = vpack.c.b16 %v584, %v583
          %601 = vmatprep.subr.bf16.mxu0 0
          %602 = vmatpush1.bf16.msra.mxu0 %v585
          %603 = vmatprep.subr.bf16.mxu0 0
          %604 = vmatpush1.bf16.msra.mxu0 %v586
          %605 = vmatprep.subr.bf16.mxu0 0
          %606 = vmatpush1.bf16.msra.mxu0 %v587
          %607 = vmatprep.subr.bf16.mxu0 0
          %608 = vmatpush1.bf16.msra.mxu0 %v588
          %609 = vmatprep.subr.bf16.mxu0 0
          %610 = vmatpush1.bf16.msra.mxu0 %v589
          %611 = vmatprep.subr.bf16.mxu0 0
          %612 = vmatpush1.bf16.msra.mxu0 %v590
          %613 = vmatprep.subr.bf16.mxu0 0
          %614 = vmatpush1.bf16.msra.mxu0 %v591
          %615 = vmatprep.subr.bf16.mxu0 0
          %616 = vmatpush1.bf16.msra.mxu0 %v592
          %617 = vmatprep.subr.bf16.mxu0 0
          %618 = vmatpush1.bf16.msra.mxu0 0
          %619 = vmatprep.subr.bf16.mxu0 0
          %620 = vmatpush1.bf16.msra.mxu0 0
          %621 = vmatprep.subr.bf16.mxu0 0
          %622 = vmatpush1.bf16.msra.mxu0 0
          %623 = vmatprep.subr.bf16.mxu0 0
          %624 = vmatpush1.bf16.msra.mxu0 0
          %625 = vmatprep.subr.bf16.mxu0 0
          %626 = vmatpush1.bf16.msra.mxu0 0
          %627 = vmatprep.subr.bf16.mxu0 0
          %628 = vmatpush1.bf16.msra.mxu0 0
          %629 = vmatprep.subr.bf16.mxu0 0
          %630 = vmatpush1.bf16.msra.mxu0 0
          %631 = vmatprep.subr.bf16.mxu0 0
          %632 = vmatpush1.bf16.msra.mxu0 0
          %633 = vmatprep.mubr.bf16.mxu0 0
          %634 = vmatmul.mubr.bf16.gmra.mrb[0].mxu0 %v536
          %v635 = vpop.f32.mrb[0].mxu0
          %v636 = vadd.f32 0.0, %v635
          %v637 = vpop.f32.mrb[0].mxu0
          %v638 = vpop.f32.mrb[0].mxu0
          %v639 = vpop.f32.mrb[0].mxu0
          %640 = vdwg.mxu0
          %641 = vst [vmem:[%s313] sm:$0x3] %v636
        $region56: #{tpu_custom_call.1} parent=35 // pred_fallthru
          _
        %s642 = sand.u32 %s159, 1
        %s643 = scalar_lea.sflag [#allocation5], %s642
        %s644 = sand.u32 %s159, 1
        %s645 = smul.addr %s644, 2
        %s646 = scalar_lea.vmem [#allocation9], %s645
        // Predicated region
        $region57: #{tpu_custom_call.1} parent=35 // pred_check
          %p647 = pneg %p169
        $region58: #{tpu_custom_call.1} parent=35 // pred_check_branch
          %649 = sbr.rel (%p647) target = $region60
        $region59: #{tpu_custom_call.1} parent=35 // pred_region
          %s651 = ssub.s32 32, 32
          %652 = vsyncadd %s643, %s651
          %s653 = sadd.s32 %s28, %s27
          %s654 = smul.addr %s653, 32
          %s655 = scalar_lea.hbm %s4, %s654
          %s657 = sshll.u32 %s646, 4
          %s658 = int_to_ptr.vmem [resolvable:$true] %s657
          %660 = dma.vmem_to_hbm [thread:$0]  %s658, 32, %s655, %s643
        $region60: #{tpu_custom_call.1} parent=35 // pred_fallthru
          _
      $region36: #{tpu_custom_call.1} parent=5 // pred_fallthru
        _
      %p661 = scmp.le.s32.totalorder 2, %s17
      // Predicated region
      $region61: #{tpu_custom_call.1} parent=5 // pred_check
        %p662 = pneg %p661
      $region62: #{tpu_custom_call.1} parent=5 // pred_check_branch
        %664 = sbr.rel (%p662) target = $region64
      $region63: #{tpu_custom_call.1} parent=5 // pred_region
        %s665 = ssub.s32 %s17, 2
        // Predicated region
        $region65: #{tpu_custom_call.1} parent=63 // pred_check
          %p666 = pneg %p175
        $region66: #{tpu_custom_call.1} parent=63 // pred_check_branch
          %668 = sbr.rel (%p666) target = $region68
        $region67: #{tpu_custom_call.1} parent=63 // pred_region
          %s669 = sand.u32 %s160, 1
          %s670 = scalar_lea.sflag [#allocation5], %s669
          %s671 = sand.u32 %s160, 1
          %s672 = smul.addr %s671, 2
          %s673 = scalar_lea.vmem [#allocation9], %s672
          %674 = dma.done %s670, 32
        $region68: #{tpu_custom_call.1} parent=63 // pred_fallthru
          _
      $region64: #{tpu_custom_call.1} parent=5 // pred_fallthru
        _
    $region6: #{tpu_custom_call.1} parent=1 // loop_footer
      %s21 = sadd.s32 1, %s17
    $region7: #{tpu_custom_call.1} parent=1 // loop_footer_branch
      %16 = sbr.rel target = $region3
    $region8: #{tpu_custom_call.1} parent=1 // loop_exit
      _
    %675 = vsyncpa [#allocation4], 1
    %s676 = scalar_lea.sflag [#allocation4], 1
    %677 = vsyncpa %s676, 1
    %678 = vsyncpa [#allocation7], 1
    %s679 = scalar_lea.sflag [#allocation7], 1
    %680 = vsyncpa %s679, 1
    %681 = vsyncpa [#allocation5], 1
    %s682 = scalar_lea.sflag [#allocation5], 1
    %683 = vsyncpa %s682, 1

</llo_original>
